<compile_context>
chip_gen: v6e
topology: v6e:2x2x1
jax: 0.10.0
libtpu: 0.0.40
codegen_flags: <defaults>
</compile_context>

<pallas_src>
import functools

import jax
import jax.numpy as jnp
import numpy as np
from jax.experimental import pallas as pl
from jax.experimental.pallas import tpu as pltpu

BN_EPS = 1e-5


# ---------------------------------------------------------------------------
# Kernel
# ---------------------------------------------------------------------------
def _matmul_fma(h, w):
    """y[o, t] = sum_ci w[o, ci] * h[ci, t] via unrolled VPU broadcast-FMAs.

    h: (Cin, T) f32 value; w: (Cout, Cin) f32 value.  Each term is a
    lane-splat of one weight column times one sublane row of h.
    """
    cout, cin = w.shape
    y = None
    for ci in range(cin):
        term = w[:, ci:ci + 1] * h[ci:ci + 1, :]      # (Cout,1)*(1,T) -> (Cout,T)
        y = term if y is None else y + term
    return y


def _layer(h, w, gamma, beta, inv_count):
    """1x1 conv (bias folded away) + training-mode BN + ReLU, (C, T) layout."""
    y = _matmul_fma(h, w)                                      # (Cout, T) f32
    # Two-pass (centered) statistics over the token axis: numerically safer
    # than E[y^2]-E[y]^2 and free since y is resident in VMEM.
    mu = jnp.sum(y, axis=1, keepdims=True) * inv_count         # (Cout, 1)
    d = y - mu
    var = jnp.sum(d * d, axis=1, keepdims=True) * inv_count    # (Cout, 1)
    scale = gamma * jax.lax.rsqrt(var + BN_EPS)                # BN -> scale/shift
    shift = beta - mu * scale
    return jnp.maximum(y * scale + shift, 0.0)


def weightnet_kernel(x_ref, p_ref, o_ref, *, layout, row_stride, cin_max,
                     inv_count):
    """x_ref: (C_in, T) input; p_ref: packed parameter slab; o_ref: (C_out, T)."""
    p = p_ref[...]
    h = x_ref[...].astype(jnp.float32)
    for l, (cin, cout) in enumerate(layout):
        r0 = l * row_stride
        w = p[r0:r0 + cout, :cin]                              # (cout, cin)
        gamma = p[r0:r0 + cout, cin_max:cin_max + 1]           # (cout, 1)
        beta = p[r0:r0 + cout, cin_max + 1:cin_max + 2]        # (cout, 1)
        h = _layer(h, w, gamma, beta, inv_count)
    o_ref[...] = h.astype(o_ref.dtype)


# ---------------------------------------------------------------------------
# Parameters / packing
# ---------------------------------------------------------------------------
def init_weightnet_params(key, in_channel, out_channel, hidden_unit=(8, 8)):
    """Deterministic synthetic parameters (same shapes as the PyTorch module)."""
    dims = [in_channel, *hidden_unit, out_channel]
    params = []
    for i in range(len(dims) - 1):
        cin, cout = dims[i], dims[i + 1]
        key, kw, kb, kg, kbe = jax.random.split(key, 5)
        bound = 1.0 / np.sqrt(cin)
        # Conv2d(cin, cout, 1) weight (cout, cin, 1, 1) stored as (cout, cin).
        w = jax.random.uniform(kw, (cout, cin), jnp.float32, -bound, bound)
        # Conv bias: consumed only by the reference; the fused kernel drops it
        # because training-mode BN's mean subtraction cancels it exactly.
        b = jax.random.uniform(kb, (1, cout, 1), jnp.float32, -bound, bound)
        gamma = 1.0 + 0.1 * jax.random.normal(kg, (1, cout, 1), jnp.float32)
        beta = 0.1 * jax.random.normal(kbe, (1, cout, 1), jnp.float32)
        params.append((w, b, gamma, beta))
    return params


def _pack_params(params):
    """Pack all (w, gamma, beta) into one f32 slab -> a single kernel input.

    Layer l occupies rows [l*row_stride, l*row_stride+cout):
      cols [0, cin)            : conv weight
      col  cin_max             : BN gamma
      col  cin_max + 1         : BN beta
    """
    cin_max = max(int(w.shape[1]) for (w, _, _, _) in params)
    cout_max = max(int(w.shape[0]) for (w, _, _, _) in params)
    row_stride = -(-cout_max // 8) * 8
    cols = cin_max + 2
    slab = jnp.zeros((len(params) * row_stride, cols), jnp.float32)
    layout = []
    for l, (w, _b, g, be) in enumerate(params):
        cout, cin = int(w.shape[0]), int(w.shape[1])
        r0 = l * row_stride
        slab = slab.at[r0:r0 + cout, :cin].set(w)
        slab = slab.at[r0:r0 + cout, cin_max].set(g.reshape(-1))
        slab = slab.at[r0:r0 + cout, cin_max + 1].set(be.reshape(-1))
        layout.append((cin, cout))
    return slab, tuple(layout), row_stride, cin_max


# ---------------------------------------------------------------------------
# Wrapper
# ---------------------------------------------------------------------------
def _padded_bytes(shape, dtype):
    """VMEM footprint estimate with (8, 128) padding on the last two dims."""
    shape = tuple(int(s) for s in shape)
    if len(shape) == 1:
        lead, rows, lanes = 1, 1, shape[0]
    else:
        lead = int(np.prod(shape[:-2])) if len(shape) > 2 else 1
        rows, lanes = shape[-2], shape[-1]
    rows_p = -(-rows // 8) * 8
    lanes_p = -(-lanes // 128) * 128
    return lead * rows_p * lanes_p * np.dtype(dtype).itemsize


def _vmem_capacity_bytes():
    """Per-generation VMEM capacity; conservative fallback = v7x per-TC 64 MiB."""
    try:
        cap = getattr(pltpu.get_tpu_info(), "vmem_capacity_bytes", None)
        if cap:
            return int(cap)
    except Exception:
        pass
    return 64 << 20


@jax.jit
def weightnet_forward(x_nchw, params):
    """x_nchw: (B, C_in, H, W) float32 -> (B, C_out, H, W) float32."""
    B, C, H, W = x_nchw.shape
    T = B * H * W
    # Fold batch into the token/lane axis: (B, C, H, W) -> (C, B*H*W).
    # The transpose is a few KiB; it removes the cross-vreg batch reduction
    # in the BN statistics and keeps a single long lane axis.
    x = x_nchw.transpose(1, 0, 2, 3).reshape(C, T)

    slab, layout, row_stride, cin_max = _pack_params(params)
    c_out = layout[-1][1]
    inv_count = 1.0 / float(T)

    # Cost hint so XLA can schedule/overlap this launch-latency-bound call.
    flops = 0
    transcendentals = 0
    for (cin, cout) in layout:
        flops += 2 * cin * cout * T        # 1x1 conv
        flops += 6 * cout * T              # stats + normalize + relu (approx)
        transcendentals += cout            # rsqrt per channel
    bytes_accessed = (x.size + c_out * T + slab.size) * 4
    cost = pl.CostEstimate(flops=flops, transcendentals=transcendentals,
                           bytes_accessed=bytes_accessed)

    io_bytes = (_padded_bytes(x.shape, x.dtype)
                + _padded_bytes((c_out, T), jnp.float32)
                + _padded_bytes(slab.shape, slab.dtype))
    # Shape-derived VMEM budget: 6x padded I/O for live intermediates, floored
    # at 8 MiB for compiler scratch, capped at half the generation's capacity.
    vmem_limit = int(min(_vmem_capacity_bytes() // 2,
                         max(8 << 20, 6 * io_bytes)))

    vmem_spec = pl.BlockSpec(memory_space=pltpu.MemorySpace.VMEM)
    out = pl.pallas_call(
        functools.partial(weightnet_kernel, layout=layout,
                          row_stride=row_stride, cin_max=cin_max,
                          inv_count=inv_count),
        out_shape=jax.ShapeDtypeStruct((c_out, T), jnp.float32),
        in_specs=[vmem_spec, vmem_spec],
        out_specs=vmem_spec,
        compiler_params=pltpu.CompilerParams(vmem_limit_bytes=vmem_limit),
        cost_estimate=cost,
    )(x, slab)

    # (C_out, B*H*W) -> (B, C_out, H, W)
    return out.reshape(c_out, B, H, W).transpose(1, 0, 2, 3)


def weightnet_reference(x_nchw, params):
    """Pure-JAX reference mirroring the PyTorch forward (training-mode BN, with bias)."""
    B, C, H, W = x_nchw.shape
    h = x_nchw.reshape(B, C, H * W).astype(jnp.float32)
    for (w, b, g, be) in params:
        y = jnp.einsum("oc,bcn->bon", w, h) + b
        mu = jnp.mean(y, axis=(0, 2), keepdims=True)
        var = jnp.mean((y - mu) ** 2, axis=(0, 2), keepdims=True)
        h = jnp.maximum((y - mu) / jnp.sqrt(var + BN_EPS) * g + be, 0.0)
    return h.reshape(B, -1, H, W)


if __name__ == "__main__":
    key = jax.random.PRNGKey(0)
    k_x, k_p = jax.random.split(key)

    # WeightNet(in_channel=3, out_channel=16, hidden_unit=[8, 8]); the input
    # is the localized_xyz tensor of shape (B, 3, K, npoint) in NCHW.
    B, C_IN, K, NPOINT = 2, 3, 16, 16
    C_OUT, HIDDEN = 16, (8, 8)

    x = jax.random.normal(k_x, (B, C_IN, K, NPOINT), jnp.float32)
    params = init_weightnet_params(k_p, C_IN, C_OUT, HIDDEN)

    out = jax.block_until_ready(weightnet_forward(x, params))
    ref = weightnet_reference(x, params)

    assert out.shape == (B, C_OUT, K, NPOINT), out.shape
    np.testing.assert_allclose(np.asarray(out), np.asarray(ref),
                               atol=1e-4, rtol=1e-4)

    print("KERNEL_OK")
</pallas_src>

<mosaic_0001>
module attributes {stable_mosaic.version = 11 : i64} {
  func.func @weightnet_kernel(%arg0: memref<3x512xf32, #tpu.memory_space<vmem>>, %arg1: memref<48x10xf32, #tpu.memory_space<vmem>>, %arg2: memref<16x512xf32, #tpu.memory_space<vmem>>) attributes {dimension_semantics = [], scalar_prefetch = 0 : i64, scratch_operands = 0 : i64, tpu.core_type = #tpu.core_type<tc>} {
    %c0 = arith.constant 0 : index
    %c0_0 = arith.constant 0 : index
    %0 = vector.load %arg1[%c0, %c0_0] : memref<48x10xf32, #tpu.memory_space<vmem>>, vector<48x10xf32>
    %c0_1 = arith.constant 0 : index
    %c0_2 = arith.constant 0 : index
    %1 = vector.load %arg0[%c0_1, %c0_2] : memref<3x512xf32, #tpu.memory_space<vmem>>, vector<3x512xf32>
    %2 = vector.extract_strided_slice %0 {offsets = [0, 0], sizes = [8, 3], strides = [1, 1]} : vector<48x10xf32> to vector<8x3xf32>
    %3 = vector.extract_strided_slice %0 {offsets = [0, 8], sizes = [8, 1], strides = [1, 1]} : vector<48x10xf32> to vector<8x1xf32>
    %4 = vector.extract_strided_slice %0 {offsets = [0, 9], sizes = [8, 1], strides = [1, 1]} : vector<48x10xf32> to vector<8x1xf32>
    %5 = vector.extract_strided_slice %2 {offsets = [0, 0], sizes = [8, 1], strides = [1, 1]} : vector<8x3xf32> to vector<8x1xf32>
    %6 = vector.extract_strided_slice %1 {offsets = [0, 0], sizes = [1, 512], strides = [1, 1]} : vector<3x512xf32> to vector<1x512xf32>
    %7 = vector.broadcast %5 : vector<8x1xf32> to vector<8x512xf32>
    %8 = vector.broadcast %6 : vector<1x512xf32> to vector<8x512xf32>
    %9 = arith.mulf %7, %8 : vector<8x512xf32>
    %10 = vector.extract_strided_slice %2 {offsets = [0, 1], sizes = [8, 1], strides = [1, 1]} : vector<8x3xf32> to vector<8x1xf32>
    %11 = vector.extract_strided_slice %1 {offsets = [1, 0], sizes = [1, 512], strides = [1, 1]} : vector<3x512xf32> to vector<1x512xf32>
    %12 = vector.broadcast %10 : vector<8x1xf32> to vector<8x512xf32>
    %13 = vector.broadcast %11 : vector<1x512xf32> to vector<8x512xf32>
    %14 = arith.mulf %12, %13 : vector<8x512xf32>
    %15 = arith.addf %9, %14 : vector<8x512xf32>
    %16 = vector.extract_strided_slice %2 {offsets = [0, 2], sizes = [8, 1], strides = [1, 1]} : vector<8x3xf32> to vector<8x1xf32>
    %17 = vector.extract_strided_slice %1 {offsets = [2, 0], sizes = [1, 512], strides = [1, 1]} : vector<3x512xf32> to vector<1x512xf32>
    %18 = vector.broadcast %16 : vector<8x1xf32> to vector<8x512xf32>
    %19 = vector.broadcast %17 : vector<1x512xf32> to vector<8x512xf32>
    %20 = arith.mulf %18, %19 : vector<8x512xf32>
    %21 = arith.addf %15, %20 : vector<8x512xf32>
    %cst = arith.constant dense<0.000000e+00> : vector<8xf32>
    %22 = vector.multi_reduction <add>, %21, %cst [1] : vector<8x512xf32> to vector<8xf32>
    %23 = vector.shape_cast %22 : vector<8xf32> to vector<8x1xf32>
    %cst_3 = arith.constant 0.001953125 : f32
    %24 = vector.broadcast %cst_3 : f32 to vector<8x1xf32>
    %25 = arith.mulf %23, %24 : vector<8x1xf32>
    %26 = vector.broadcast %25 : vector<8x1xf32> to vector<8x512xf32>
    %27 = arith.subf %21, %26 : vector<8x512xf32>
    %28 = arith.mulf %27, %27 : vector<8x512xf32>
    %cst_4 = arith.constant dense<0.000000e+00> : vector<8xf32>
    %29 = vector.multi_reduction <add>, %28, %cst_4 [1] : vector<8x512xf32> to vector<8xf32>
    %30 = vector.shape_cast %29 : vector<8xf32> to vector<8x1xf32>
    %cst_5 = arith.constant 0.001953125 : f32
    %31 = vector.broadcast %cst_5 : f32 to vector<8x1xf32>
    %32 = arith.mulf %30, %31 : vector<8x1xf32>
    %cst_6 = arith.constant 9.99999974E-6 : f32
    %33 = vector.broadcast %cst_6 : f32 to vector<8x1xf32>
    %34 = arith.addf %32, %33 : vector<8x1xf32>
    %35 = math.rsqrt %34 : vector<8x1xf32>
    %36 = arith.mulf %3, %35 : vector<8x1xf32>
    %37 = arith.mulf %25, %36 : vector<8x1xf32>
    %38 = arith.subf %4, %37 : vector<8x1xf32>
    %39 = vector.broadcast %36 : vector<8x1xf32> to vector<8x512xf32>
    %40 = arith.mulf %21, %39 : vector<8x512xf32>
    %41 = vector.broadcast %38 : vector<8x1xf32> to vector<8x512xf32>
    %42 = arith.addf %40, %41 : vector<8x512xf32>
    %cst_7 = arith.constant 0.000000e+00 : f32
    %43 = vector.broadcast %cst_7 : f32 to vector<8x512xf32>
    %44 = arith.maximumf %42, %43 : vector<8x512xf32>
    %45 = vector.extract_strided_slice %0 {offsets = [16, 0], sizes = [8, 8], strides = [1, 1]} : vector<48x10xf32> to vector<8x8xf32>
    %46 = vector.extract_strided_slice %0 {offsets = [16, 8], sizes = [8, 1], strides = [1, 1]} : vector<48x10xf32> to vector<8x1xf32>
    %47 = vector.extract_strided_slice %0 {offsets = [16, 9], sizes = [8, 1], strides = [1, 1]} : vector<48x10xf32> to vector<8x1xf32>
    %48 = vector.extract_strided_slice %45 {offsets = [0, 0], sizes = [8, 1], strides = [1, 1]} : vector<8x8xf32> to vector<8x1xf32>
    %49 = vector.extract_strided_slice %44 {offsets = [0, 0], sizes = [1, 512], strides = [1, 1]} : vector<8x512xf32> to vector<1x512xf32>
    %50 = vector.broadcast %48 : vector<8x1xf32> to vector<8x512xf32>
    %51 = vector.broadcast %49 : vector<1x512xf32> to vector<8x512xf32>
    %52 = arith.mulf %50, %51 : vector<8x512xf32>
    %53 = vector.extract_strided_slice %45 {offsets = [0, 1], sizes = [8, 1], strides = [1, 1]} : vector<8x8xf32> to vector<8x1xf32>
    %54 = vector.extract_strided_slice %44 {offsets = [1, 0], sizes = [1, 512], strides = [1, 1]} : vector<8x512xf32> to vector<1x512xf32>
    %55 = vector.broadcast %53 : vector<8x1xf32> to vector<8x512xf32>
    %56 = vector.broadcast %54 : vector<1x512xf32> to vector<8x512xf32>
    %57 = arith.mulf %55, %56 : vector<8x512xf32>
    %58 = arith.addf %52, %57 : vector<8x512xf32>
    %59 = vector.extract_strided_slice %45 {offsets = [0, 2], sizes = [8, 1], strides = [1, 1]} : vector<8x8xf32> to vector<8x1xf32>
    %60 = vector.extract_strided_slice %44 {offsets = [2, 0], sizes = [1, 512], strides = [1, 1]} : vector<8x512xf32> to vector<1x512xf32>
    %61 = vector.broadcast %59 : vector<8x1xf32> to vector<8x512xf32>
    %62 = vector.broadcast %60 : vector<1x512xf32> to vector<8x512xf32>
    %63 = arith.mulf %61, %62 : vector<8x512xf32>
    %64 = arith.addf %58, %63 : vector<8x512xf32>
    %65 = vector.extract_strided_slice %45 {offsets = [0, 3], sizes = [8, 1], strides = [1, 1]} : vector<8x8xf32> to vector<8x1xf32>
    %66 = vector.extract_strided_slice %44 {offsets = [3, 0], sizes = [1, 512], strides = [1, 1]} : vector<8x512xf32> to vector<1x512xf32>
    %67 = vector.broadcast %65 : vector<8x1xf32> to vector<8x512xf32>
    %68 = vector.broadcast %66 : vector<1x512xf32> to vector<8x512xf32>
    %69 = arith.mulf %67, %68 : vector<8x512xf32>
    %70 = arith.addf %64, %69 : vector<8x512xf32>
    %71 = vector.extract_strided_slice %45 {offsets = [0, 4], sizes = [8, 1], strides = [1, 1]} : vector<8x8xf32> to vector<8x1xf32>
    %72 = vector.extract_strided_slice %44 {offsets = [4, 0], sizes = [1, 512], strides = [1, 1]} : vector<8x512xf32> to vector<1x512xf32>
    %73 = vector.broadcast %71 : vector<8x1xf32> to vector<8x512xf32>
    %74 = vector.broadcast %72 : vector<1x512xf32> to vector<8x512xf32>
    %75 = arith.mulf %73, %74 : vector<8x512xf32>
    %76 = arith.addf %70, %75 : vector<8x512xf32>
    %77 = vector.extract_strided_slice %45 {offsets = [0, 5], sizes = [8, 1], strides = [1, 1]} : vector<8x8xf32> to vector<8x1xf32>
    %78 = vector.extract_strided_slice %44 {offsets = [5, 0], sizes = [1, 512], strides = [1, 1]} : vector<8x512xf32> to vector<1x512xf32>
    %79 = vector.broadcast %77 : vector<8x1xf32> to vector<8x512xf32>
    %80 = vector.broadcast %78 : vector<1x512xf32> to vector<8x512xf32>
    %81 = arith.mulf %79, %80 : vector<8x512xf32>
    %82 = arith.addf %76, %81 : vector<8x512xf32>
    %83 = vector.extract_strided_slice %45 {offsets = [0, 6], sizes = [8, 1], strides = [1, 1]} : vector<8x8xf32> to vector<8x1xf32>
    %84 = vector.extract_strided_slice %44 {offsets = [6, 0], sizes = [1, 512], strides = [1, 1]} : vector<8x512xf32> to vector<1x512xf32>
    %85 = vector.broadcast %83 : vector<8x1xf32> to vector<8x512xf32>
    %86 = vector.broadcast %84 : vector<1x512xf32> to vector<8x512xf32>
    %87 = arith.mulf %85, %86 : vector<8x512xf32>
    %88 = arith.addf %82, %87 : vector<8x512xf32>
    %89 = vector.extract_strided_slice %45 {offsets = [0, 7], sizes = [8, 1], strides = [1, 1]} : vector<8x8xf32> to vector<8x1xf32>
    %90 = vector.extract_strided_slice %44 {offsets = [7, 0], sizes = [1, 512], strides = [1, 1]} : vector<8x512xf32> to vector<1x512xf32>
    %91 = vector.broadcast %89 : vector<8x1xf32> to vector<8x512xf32>
    %92 = vector.broadcast %90 : vector<1x512xf32> to vector<8x512xf32>
    %93 = arith.mulf %91, %92 : vector<8x512xf32>
    %94 = arith.addf %88, %93 : vector<8x512xf32>
    %cst_8 = arith.constant dense<0.000000e+00> : vector<8xf32>
    %95 = vector.multi_reduction <add>, %94, %cst_8 [1] : vector<8x512xf32> to vector<8xf32>
    %96 = vector.shape_cast %95 : vector<8xf32> to vector<8x1xf32>
    %cst_9 = arith.constant 0.001953125 : f32
    %97 = vector.broadcast %cst_9 : f32 to vector<8x1xf32>
    %98 = arith.mulf %96, %97 : vector<8x1xf32>
    %99 = vector.broadcast %98 : vector<8x1xf32> to vector<8x512xf32>
    %100 = arith.subf %94, %99 : vector<8x512xf32>
    %101 = arith.mulf %100, %100 : vector<8x512xf32>
    %cst_10 = arith.constant dense<0.000000e+00> : vector<8xf32>
    %102 = vector.multi_reduction <add>, %101, %cst_10 [1] : vector<8x512xf32> to vector<8xf32>
    %103 = vector.shape_cast %102 : vector<8xf32> to vector<8x1xf32>
    %cst_11 = arith.constant 0.001953125 : f32
    %104 = vector.broadcast %cst_11 : f32 to vector<8x1xf32>
    %105 = arith.mulf %103, %104 : vector<8x1xf32>
    %cst_12 = arith.constant 9.99999974E-6 : f32
    %106 = vector.broadcast %cst_12 : f32 to vector<8x1xf32>
    %107 = arith.addf %105, %106 : vector<8x1xf32>
    %108 = math.rsqrt %107 : vector<8x1xf32>
    %109 = arith.mulf %46, %108 : vector<8x1xf32>
    %110 = arith.mulf %98, %109 : vector<8x1xf32>
    %111 = arith.subf %47, %110 : vector<8x1xf32>
    %112 = vector.broadcast %109 : vector<8x1xf32> to vector<8x512xf32>
    %113 = arith.mulf %94, %112 : vector<8x512xf32>
    %114 = vector.broadcast %111 : vector<8x1xf32> to vector<8x512xf32>
    %115 = arith.addf %113, %114 : vector<8x512xf32>
    %cst_13 = arith.constant 0.000000e+00 : f32
    %116 = vector.broadcast %cst_13 : f32 to vector<8x512xf32>
    %117 = arith.maximumf %115, %116 : vector<8x512xf32>
    %118 = vector.extract_strided_slice %0 {offsets = [32, 0], sizes = [16, 8], strides = [1, 1]} : vector<48x10xf32> to vector<16x8xf32>
    %119 = vector.extract_strided_slice %0 {offsets = [32, 8], sizes = [16, 1], strides = [1, 1]} : vector<48x10xf32> to vector<16x1xf32>
    %120 = vector.extract_strided_slice %0 {offsets = [32, 9], sizes = [16, 1], strides = [1, 1]} : vector<48x10xf32> to vector<16x1xf32>
    %121 = vector.extract_strided_slice %118 {offsets = [0, 0], sizes = [16, 1], strides = [1, 1]} : vector<16x8xf32> to vector<16x1xf32>
    %122 = vector.extract_strided_slice %117 {offsets = [0, 0], sizes = [1, 512], strides = [1, 1]} : vector<8x512xf32> to vector<1x512xf32>
    %123 = vector.broadcast %121 : vector<16x1xf32> to vector<16x512xf32>
    %124 = vector.broadcast %122 : vector<1x512xf32> to vector<16x512xf32>
    %125 = arith.mulf %123, %124 : vector<16x512xf32>
    %126 = vector.extract_strided_slice %118 {offsets = [0, 1], sizes = [16, 1], strides = [1, 1]} : vector<16x8xf32> to vector<16x1xf32>
    %127 = vector.extract_strided_slice %117 {offsets = [1, 0], sizes = [1, 512], strides = [1, 1]} : vector<8x512xf32> to vector<1x512xf32>
    %128 = vector.broadcast %126 : vector<16x1xf32> to vector<16x512xf32>
    %129 = vector.broadcast %127 : vector<1x512xf32> to vector<16x512xf32>
    %130 = arith.mulf %128, %129 : vector<16x512xf32>
    %131 = arith.addf %125, %130 : vector<16x512xf32>
    %132 = vector.extract_strided_slice %118 {offsets = [0, 2], sizes = [16, 1], strides = [1, 1]} : vector<16x8xf32> to vector<16x1xf32>
    %133 = vector.extract_strided_slice %117 {offsets = [2, 0], sizes = [1, 512], strides = [1, 1]} : vector<8x512xf32> to vector<1x512xf32>
    %134 = vector.broadcast %132 : vector<16x1xf32> to vector<16x512xf32>
    %135 = vector.broadcast %133 : vector<1x512xf32> to vector<16x512xf32>
    %136 = arith.mulf %134, %135 : vector<16x512xf32>
    %137 = arith.addf %131, %136 : vector<16x512xf32>
    %138 = vector.extract_strided_slice %118 {offsets = [0, 3], sizes = [16, 1], strides = [1, 1]} : vector<16x8xf32> to vector<16x1xf32>
    %139 = vector.extract_strided_slice %117 {offsets = [3, 0], sizes = [1, 512], strides = [1, 1]} : vector<8x512xf32> to vector<1x512xf32>
    %140 = vector.broadcast %138 : vector<16x1xf32> to vector<16x512xf32>
    %141 = vector.broadcast %139 : vector<1x512xf32> to vector<16x512xf32>
    %142 = arith.mulf %140, %141 : vector<16x512xf32>
    %143 = arith.addf %137, %142 : vector<16x512xf32>
    %144 = vector.extract_strided_slice %118 {offsets = [0, 4], sizes = [16, 1], strides = [1, 1]} : vector<16x8xf32> to vector<16x1xf32>
    %145 = vector.extract_strided_slice %117 {offsets = [4, 0], sizes = [1, 512], strides = [1, 1]} : vector<8x512xf32> to vector<1x512xf32>
    %146 = vector.broadcast %144 : vector<16x1xf32> to vector<16x512xf32>
    %147 = vector.broadcast %145 : vector<1x512xf32> to vector<16x512xf32>
    %148 = arith.mulf %146, %147 : vector<16x512xf32>
    %149 = arith.addf %143, %148 : vector<16x512xf32>
    %150 = vector.extract_strided_slice %118 {offsets = [0, 5], sizes = [16, 1], strides = [1, 1]} : vector<16x8xf32> to vector<16x1xf32>
    %151 = vector.extract_strided_slice %117 {offsets = [5, 0], sizes = [1, 512], strides = [1, 1]} : vector<8x512xf32> to vector<1x512xf32>
    %152 = vector.broadcast %150 : vector<16x1xf32> to vector<16x512xf32>
    %153 = vector.broadcast %151 : vector<1x512xf32> to vector<16x512xf32>
    %154 = arith.mulf %152, %153 : vector<16x512xf32>
    %155 = arith.addf %149, %154 : vector<16x512xf32>
    %156 = vector.extract_strided_slice %118 {offsets = [0, 6], sizes = [16, 1], strides = [1, 1]} : vector<16x8xf32> to vector<16x1xf32>
    %157 = vector.extract_strided_slice %117 {offsets = [6, 0], sizes = [1, 512], strides = [1, 1]} : vector<8x512xf32> to vector<1x512xf32>
    %158 = vector.broadcast %156 : vector<16x1xf32> to vector<16x512xf32>
    %159 = vector.broadcast %157 : vector<1x512xf32> to vector<16x512xf32>
    %160 = arith.mulf %158, %159 : vector<16x512xf32>
    %161 = arith.addf %155, %160 : vector<16x512xf32>
    %162 = vector.extract_strided_slice %118 {offsets = [0, 7], sizes = [16, 1], strides = [1, 1]} : vector<16x8xf32> to vector<16x1xf32>
    %163 = vector.extract_strided_slice %117 {offsets = [7, 0], sizes = [1, 512], strides = [1, 1]} : vector<8x512xf32> to vector<1x512xf32>
    %164 = vector.broadcast %162 : vector<16x1xf32> to vector<16x512xf32>
    %165 = vector.broadcast %163 : vector<1x512xf32> to vector<16x512xf32>
    %166 = arith.mulf %164, %165 : vector<16x512xf32>
    %167 = arith.addf %161, %166 : vector<16x512xf32>
    %cst_14 = arith.constant dense<0.000000e+00> : vector<16xf32>
    %168 = vector.multi_reduction <add>, %167, %cst_14 [1] : vector<16x512xf32> to vector<16xf32>
    %169 = vector.shape_cast %168 : vector<16xf32> to vector<16x1xf32>
    %cst_15 = arith.constant 0.001953125 : f32
    %170 = vector.broadcast %cst_15 : f32 to vector<16x1xf32>
    %171 = arith.mulf %169, %170 : vector<16x1xf32>
    %172 = vector.broadcast %171 : vector<16x1xf32> to vector<16x512xf32>
    %173 = arith.subf %167, %172 : vector<16x512xf32>
    %174 = arith.mulf %173, %173 : vector<16x512xf32>
    %cst_16 = arith.constant dense<0.000000e+00> : vector<16xf32>
    %175 = vector.multi_reduction <add>, %174, %cst_16 [1] : vector<16x512xf32> to vector<16xf32>
    %176 = vector.shape_cast %175 : vector<16xf32> to vector<16x1xf32>
    %cst_17 = arith.constant 0.001953125 : f32
    %177 = vector.broadcast %cst_17 : f32 to vector<16x1xf32>
    %178 = arith.mulf %176, %177 : vector<16x1xf32>
    %cst_18 = arith.constant 9.99999974E-6 : f32
    %179 = vector.broadcast %cst_18 : f32 to vector<16x1xf32>
    %180 = arith.addf %178, %179 : vector<16x1xf32>
    %181 = math.rsqrt %180 : vector<16x1xf32>
    %182 = arith.mulf %119, %181 : vector<16x1xf32>
    %183 = arith.mulf %171, %182 : vector<16x1xf32>
    %184 = arith.subf %120, %183 : vector<16x1xf32>
    %185 = vector.broadcast %182 : vector<16x1xf32> to vector<16x512xf32>
    %186 = arith.mulf %167, %185 : vector<16x512xf32>
    %187 = vector.broadcast %184 : vector<16x1xf32> to vector<16x512xf32>
    %188 = arith.addf %186, %187 : vector<16x512xf32>
    %cst_19 = arith.constant 0.000000e+00 : f32
    %189 = vector.broadcast %cst_19 : f32 to vector<16x512xf32>
    %190 = arith.maximumf %188, %189 : vector<16x512xf32>
    %c0_20 = arith.constant 0 : index
    %c0_21 = arith.constant 0 : index
    %191 = vector.load %arg2[%c0_20, %c0_21] : memref<16x512xf32, #tpu.memory_space<vmem>>, vector<16x512xf32>
    tpu.vector_store %arg2[%c0_20, %c0_21], %190 {strides = array<i32>} : memref<16x512xf32, #tpu.memory_space<vmem>>, vector<16x512xf32>,
    return
  }
}

</mosaic_0001>

<llo_original>
// kernel: weightnet_forward.1
$region0: #{weightnet_forward.1}
  #allocation0 [shape = 'u32[]', space=smem, size = 0x4, offset = 0x4, fixed_abs, tag = 'smem constant byte address 0x4 - core index']
  #allocation1 [shape = 'u32[144,128]{1,0:T(1,128)}', space=vmem, size = 0x12000, scoped, tag = 'internal scratch']
  %s0 = inlined_call_operand.vmem [shape: f32[3,512], index: 0, kind: input, shape index: {}]
  %s1 = inlined_call_operand.vmem [shape: f32[48,10], index: 1, kind: input, shape index: {}]
  %s2 = inlined_call_operand.vmem [shape: f32[16,512], index: 2, kind: output, shape index: {}]
  %s3 = sld [smem:[#allocation0]]
  $region18: #{weightnet_forward.1} parent=0
    _
  %s5 = ssub.s32 1, %s3
  %s6 = scalar_select 0, %s5, %s3
  // Predicated region
  $region2: #{weightnet_forward.1} parent=0 // pred_check
    _
  $region3: #{weightnet_forward.1} parent=0 // pred_check_branch
    %8 = sbr.rel (0) target = $region5
  $region4: #{weightnet_forward.1} parent=0 // pred_region
    _
  $region5: #{weightnet_forward.1} parent=0 // pred_fallthru
    _
  // Predicated region
  $region6: #{weightnet_forward.1} parent=0 // pred_check
    _
  $region7: #{weightnet_forward.1} parent=0 // pred_check_branch
    %10 = sbr.rel (0) target = $region9
  $region8: #{weightnet_forward.1} parent=0 // pred_region
    _
  $region9: #{weightnet_forward.1} parent=0 // pred_fallthru
    _
  %v11 = vld [vmem:[%s1] sm:$0xff]
  %v12 = vld [vmem:[%s1 + $0x10] sm:$0xff]
  %v13 = vld [vmem:[%s1 + $0x20] sm:$0xff]
  %v14 = vld [vmem:[%s1 + $0x28] sm:$0xff]
  %v15 = vld [vmem:[%s0] sm:$0x77]
  %v16 = vld [vmem:[%s0 + $0x8] sm:$0x77]
  %18 = vset.pattern.permute.xlu0 0
  %19 = vperm.xlu0 %18, %v11
  %v20 = vpop.permute.xlu0 %19
  %v24 = vlaneseq
  %v25 = vshrl.u32 %v24, 7
  %v26 = vsub.s32 0, %v25
  %v27 = vrot.slane %v15, %v26
  %v28 = vlaneseq
  %v29 = vshrl.u32 %v28, 7
  %v30 = vsub.s32 4, %v29
  %v31 = vrot.slane %v15, %v30
  %v32 = vlaneseq
  %v33 = vshrl.u32 %v32, 7
  %v34 = vsub.s32 0, %v33
  %v35 = vrot.slane %v16, %v34
  %v36 = vlaneseq
  %v37 = vshrl.u32 %v36, 7
  %v38 = vsub.s32 4, %v37
  %v39 = vrot.slane %v16, %v38
  %v44 = vlaneseq
  %v45 = vshrl.u32 %v44, 7
  %v46 = vsub.s32 0, %v45
  %v47 = vrot.slane %v27, %v46
  %v48 = vlaneseq
  %v49 = vshrl.u32 %v48, 7
  %v50 = vsub.s32 0, %v49
  %v51 = vrot.slane %v31, %v50
  %v52 = vlaneseq
  %v53 = vshrl.u32 %v52, 7
  %v54 = vsub.s32 0, %v53
  %v55 = vrot.slane %v35, %v54
  %v56 = vlaneseq
  %v57 = vshrl.u32 %v56, 7
  %v58 = vsub.s32 0, %v57
  %v59 = vrot.slane %v39, %v58
  %v60 = vmul.f32 %v20, %v47
  %v61 = vmul.f32 %v20, %v51
  %v62 = vmul.f32 %v20, %v55
  %v63 = vmul.f32 %v20, %v59
  %64 = vset.pattern.permute.xlu0 1
  %65 = vperm.xlu0 %64, %v11
  %v66 = vpop.permute.xlu0 %65
  %v68 = vlaneseq
  %v69 = vshrl.u32 %v68, 7
  %v70 = vsub.s32 1, %v69
  %v71 = vrot.slane %v15, %v70
  %v72 = vlaneseq
  %v73 = vshrl.u32 %v72, 7
  %v74 = vsub.s32 5, %v73
  %v75 = vrot.slane %v15, %v74
  %v76 = vlaneseq
  %v77 = vshrl.u32 %v76, 7
  %v78 = vsub.s32 1, %v77
  %v79 = vrot.slane %v16, %v78
  %v80 = vlaneseq
  %v81 = vshrl.u32 %v80, 7
  %v82 = vsub.s32 5, %v81
  %v83 = vrot.slane %v16, %v82
  %v88 = vlaneseq
  %v89 = vshrl.u32 %v88, 7
  %v90 = vsub.s32 1, %v89
  %v91 = vrot.slane %v71, %v90
  %v92 = vlaneseq
  %v93 = vshrl.u32 %v92, 7
  %v94 = vsub.s32 1, %v93
  %v95 = vrot.slane %v75, %v94
  %v96 = vlaneseq
  %v97 = vshrl.u32 %v96, 7
  %v98 = vsub.s32 1, %v97
  %v99 = vrot.slane %v79, %v98
  %v100 = vlaneseq
  %v101 = vshrl.u32 %v100, 7
  %v102 = vsub.s32 1, %v101
  %v103 = vrot.slane %v83, %v102
  %v104 = vmul.f32 %v66, %v91
  %v105 = vmul.f32 %v66, %v95
  %v106 = vmul.f32 %v66, %v99
  %v107 = vmul.f32 %v66, %v103
  %v108 = vadd.f32 %v60, %v104
  %v109 = vadd.f32 %v61, %v105
  %v110 = vadd.f32 %v62, %v106
  %v111 = vadd.f32 %v63, %v107
  %112 = vset.pattern.permute.xlu0 2
  %113 = vperm.xlu0 %112, %v11
  %v114 = vpop.permute.xlu0 %113
  %v116 = vlaneseq
  %v117 = vshrl.u32 %v116, 7
  %v118 = vsub.s32 2, %v117
  %v119 = vrot.slane %v15, %v118
  %v120 = vlaneseq
  %v121 = vshrl.u32 %v120, 7
  %v122 = vsub.s32 6, %v121
  %v123 = vrot.slane %v15, %v122
  %v124 = vlaneseq
  %v125 = vshrl.u32 %v124, 7
  %v126 = vsub.s32 2, %v125
  %v127 = vrot.slane %v16, %v126
  %v128 = vlaneseq
  %v129 = vshrl.u32 %v128, 7
  %v130 = vsub.s32 6, %v129
  %v131 = vrot.slane %v16, %v130
  %v136 = vlaneseq
  %v137 = vshrl.u32 %v136, 7
  %v138 = vsub.s32 2, %v137
  %v139 = vrot.slane %v119, %v138
  %v140 = vlaneseq
  %v141 = vshrl.u32 %v140, 7
  %v142 = vsub.s32 2, %v141
  %v143 = vrot.slane %v123, %v142
  %v144 = vlaneseq
  %v145 = vshrl.u32 %v144, 7
  %v146 = vsub.s32 2, %v145
  %v147 = vrot.slane %v127, %v146
  %v148 = vlaneseq
  %v149 = vshrl.u32 %v148, 7
  %v150 = vsub.s32 2, %v149
  %v151 = vrot.slane %v131, %v150
  %v152 = vmul.f32 %v114, %v139
  %v153 = vmul.f32 %v114, %v143
  %v154 = vmul.f32 %v114, %v147
  %v155 = vmul.f32 %v114, %v151
  %v156 = vadd.f32 %v108, %v152
  %v157 = vadd.f32 %v109, %v153
  %v158 = vadd.f32 %v110, %v154
  %v159 = vadd.f32 %v111, %v155
  %v160 = vadd.f32 %v156, %v157
  %v161 = vadd.f32 %v160, %v158
  %v162 = vadd.f32 %v161, %v159
  %163 = vadd.xlane.f32.xlu0 %v162
  %v164 = vpop.xlane.xlu0 %163
  %v165 = vmul.f32 %v164, 0.001953125
  %v166 = vsub.f32 %v156, %v165
  %v167 = vsub.f32 %v157, %v165
  %v168 = vsub.f32 %v158, %v165
  %v169 = vsub.f32 %v159, %v165
  %v170 = vmul.f32 %v166, %v166
  %v171 = vmul.f32 %v167, %v167
  %v172 = vmul.f32 %v168, %v168
  %v173 = vmul.f32 %v169, %v169
  %v174 = vadd.f32 %v170, %v171
  %v175 = vadd.f32 %v174, %v172
  %v176 = vadd.f32 %v175, %v173
  %177 = vadd.xlane.f32.xlu0 %v176
  %v178 = vpop.xlane.xlu0 %177
  %v179 = vmul.f32 %v178, 0.001953125
  %v180 = vadd.f32 %v179, 1e-05
  %v181 = vrsqrt.pop %v180
  %v182 = vmul.f32 %v11, %v181
  %v183 = vmul.f32 %v165, %v182
  %185 = vrot.lane.b32.xlu0 %v183, 1
  %v186 = vpop.permute.xlu0 %185
  %v188 = vsub.f32 %v11, %v186
  %190 = vset.pattern.permute.xlu0 8
  %191 = vperm.xlu0 %190, %v182
  %v192 = vpop.permute.xlu0 %191
  %v194 = vmul.f32 %v156, %v192
  %v195 = vmul.f32 %v157, %v192
  %v196 = vmul.f32 %v158, %v192
  %v197 = vmul.f32 %v159, %v192
  %199 = vset.pattern.permute.xlu0 9
  %200 = vperm.xlu0 %199, %v188
  %v201 = vpop.permute.xlu0 %200
  %v203 = vadd.f32 %v194, %v201
  %v204 = vadd.f32 %v195, %v201
  %v205 = vadd.f32 %v196, %v201
  %v206 = vadd.f32 %v197, %v201
  %v207 = vmax.f32 %v203, 0.0
  %v208 = vmax.f32 %v204, 0.0
  %v209 = vmax.f32 %v205, 0.0
  %v210 = vmax.f32 %v206, 0.0
  %212 = vset.pattern.permute.xlu0 0
  %213 = vperm.xlu0 %212, %v12
  %v214 = vpop.permute.xlu0 %213
  %v216 = vlaneseq
  %v217 = vshrl.u32 %v216, 7
  %v218 = vsub.s32 0, %v217
  %v219 = vrot.slane %v207, %v218
  %v220 = vlaneseq
  %v221 = vshrl.u32 %v220, 7
  %v222 = vsub.s32 0, %v221
  %v223 = vrot.slane %v208, %v222
  %v224 = vlaneseq
  %v225 = vshrl.u32 %v224, 7
  %v226 = vsub.s32 0, %v225
  %v227 = vrot.slane %v209, %v226
  %v228 = vlaneseq
  %v229 = vshrl.u32 %v228, 7
  %v230 = vsub.s32 0, %v229
  %v231 = vrot.slane %v210, %v230
  %v232 = vmul.f32 %v214, %v219
  %v233 = vmul.f32 %v214, %v223
  %v234 = vmul.f32 %v214, %v227
  %v235 = vmul.f32 %v214, %v231
  %236 = vset.pattern.permute.xlu0 1
  %237 = vperm.xlu0 %236, %v12
  %v238 = vpop.permute.xlu0 %237
  %v240 = vlaneseq
  %v241 = vshrl.u32 %v240, 7
  %v242 = vsub.s32 1, %v241
  %v243 = vrot.slane %v207, %v242
  %v244 = vlaneseq
  %v245 = vshrl.u32 %v244, 7
  %v246 = vsub.s32 1, %v245
  %v247 = vrot.slane %v208, %v246
  %v248 = vlaneseq
  %v249 = vshrl.u32 %v248, 7
  %v250 = vsub.s32 1, %v249
  %v251 = vrot.slane %v209, %v250
  %v252 = vlaneseq
  %v253 = vshrl.u32 %v252, 7
  %v254 = vsub.s32 1, %v253
  %v255 = vrot.slane %v210, %v254
  %v256 = vmul.f32 %v238, %v243
  %v257 = vmul.f32 %v238, %v247
  %v258 = vmul.f32 %v238, %v251
  %v259 = vmul.f32 %v238, %v255
  %v260 = vadd.f32 %v232, %v256
  %v261 = vadd.f32 %v233, %v257
  %v262 = vadd.f32 %v234, %v258
  %v263 = vadd.f32 %v235, %v259
  %264 = vset.pattern.permute.xlu0 2
  %265 = vperm.xlu0 %264, %v12
  %v266 = vpop.permute.xlu0 %265
  %v268 = vlaneseq
  %v269 = vshrl.u32 %v268, 7
  %v270 = vsub.s32 2, %v269
  %v271 = vrot.slane %v207, %v270
  %v272 = vlaneseq
  %v273 = vshrl.u32 %v272, 7
  %v274 = vsub.s32 2, %v273
  %v275 = vrot.slane %v208, %v274
  %v276 = vlaneseq
  %v277 = vshrl.u32 %v276, 7
  %v278 = vsub.s32 2, %v277
  %v279 = vrot.slane %v209, %v278
  %v280 = vlaneseq
  %v281 = vshrl.u32 %v280, 7
  %v282 = vsub.s32 2, %v281
  %v283 = vrot.slane %v210, %v282
  %v284 = vmul.f32 %v266, %v271
  %v285 = vmul.f32 %v266, %v275
  %v286 = vmul.f32 %v266, %v279
  %v287 = vmul.f32 %v266, %v283
  %v288 = vadd.f32 %v260, %v284
  %v289 = vadd.f32 %v261, %v285
  %v290 = vadd.f32 %v262, %v286
  %v291 = vadd.f32 %v263, %v287
  %292 = vset.pattern.permute.xlu0 3
  %293 = vperm.xlu0 %292, %v12
  %v294 = vpop.permute.xlu0 %293
  %v296 = vlaneseq
  %v297 = vshrl.u32 %v296, 7
  %v298 = vsub.s32 3, %v297
  %v299 = vrot.slane %v207, %v298
  %v300 = vlaneseq
  %v301 = vshrl.u32 %v300, 7
  %v302 = vsub.s32 3, %v301
  %v303 = vrot.slane %v208, %v302
  %v304 = vlaneseq
  %v305 = vshrl.u32 %v304, 7
  %v306 = vsub.s32 3, %v305
  %v307 = vrot.slane %v209, %v306
  %v308 = vlaneseq
  %v309 = vshrl.u32 %v308, 7
  %v310 = vsub.s32 3, %v309
  %v311 = vrot.slane %v210, %v310
  %v312 = vmul.f32 %v294, %v299
  %v313 = vmul.f32 %v294, %v303
  %v314 = vmul.f32 %v294, %v307
  %v315 = vmul.f32 %v294, %v311
  %v316 = vadd.f32 %v288, %v312
  %v317 = vadd.f32 %v289, %v313
  %v318 = vadd.f32 %v290, %v314
  %v319 = vadd.f32 %v291, %v315
  %320 = vset.pattern.permute.xlu0 4
  %321 = vperm.xlu0 %320, %v12
  %v322 = vpop.permute.xlu0 %321
  %v324 = vlaneseq
  %v325 = vshrl.u32 %v324, 7
  %v326 = vsub.s32 4, %v325
  %v327 = vrot.slane %v207, %v326
  %v328 = vlaneseq
  %v329 = vshrl.u32 %v328, 7
  %v330 = vsub.s32 4, %v329
  %v331 = vrot.slane %v208, %v330
  %v332 = vlaneseq
  %v333 = vshrl.u32 %v332, 7
  %v334 = vsub.s32 4, %v333
  %v335 = vrot.slane %v209, %v334
  %v336 = vlaneseq
  %v337 = vshrl.u32 %v336, 7
  %v338 = vsub.s32 4, %v337
  %v339 = vrot.slane %v210, %v338
  %v340 = vmul.f32 %v322, %v327
  %v341 = vmul.f32 %v322, %v331
  %v342 = vmul.f32 %v322, %v335
  %v343 = vmul.f32 %v322, %v339
  %v344 = vadd.f32 %v316, %v340
  %v345 = vadd.f32 %v317, %v341
  %v346 = vadd.f32 %v318, %v342
  %v347 = vadd.f32 %v319, %v343
  %348 = vset.pattern.permute.xlu0 5
  %349 = vperm.xlu0 %348, %v12
  %v350 = vpop.permute.xlu0 %349
  %v352 = vlaneseq
  %v353 = vshrl.u32 %v352, 7
  %v354 = vsub.s32 5, %v353
  %v355 = vrot.slane %v207, %v354
  %v356 = vlaneseq
  %v357 = vshrl.u32 %v356, 7
  %v358 = vsub.s32 5, %v357
  %v359 = vrot.slane %v208, %v358
  %v360 = vlaneseq
  %v361 = vshrl.u32 %v360, 7
  %v362 = vsub.s32 5, %v361
  %v363 = vrot.slane %v209, %v362
  %v364 = vlaneseq
  %v365 = vshrl.u32 %v364, 7
  %v366 = vsub.s32 5, %v365
  %v367 = vrot.slane %v210, %v366
  %v368 = vmul.f32 %v350, %v355
  %v369 = vmul.f32 %v350, %v359
  %v370 = vmul.f32 %v350, %v363
  %v371 = vmul.f32 %v350, %v367
  %v372 = vadd.f32 %v344, %v368
  %v373 = vadd.f32 %v345, %v369
  %v374 = vadd.f32 %v346, %v370
  %v375 = vadd.f32 %v347, %v371
  %376 = vset.pattern.permute.xlu0 6
  %377 = vperm.xlu0 %376, %v12
  %v378 = vpop.permute.xlu0 %377
  %v380 = vlaneseq
  %v381 = vshrl.u32 %v380, 7
  %v382 = vsub.s32 6, %v381
  %v383 = vrot.slane %v207, %v382
  %v384 = vlaneseq
  %v385 = vshrl.u32 %v384, 7
  %v386 = vsub.s32 6, %v385
  %v387 = vrot.slane %v208, %v386
  %v388 = vlaneseq
  %v389 = vshrl.u32 %v388, 7
  %v390 = vsub.s32 6, %v389
  %v391 = vrot.slane %v209, %v390
  %v392 = vlaneseq
  %v393 = vshrl.u32 %v392, 7
  %v394 = vsub.s32 6, %v393
  %v395 = vrot.slane %v210, %v394
  %v396 = vmul.f32 %v378, %v383
  %v397 = vmul.f32 %v378, %v387
  %v398 = vmul.f32 %v378, %v391
  %v399 = vmul.f32 %v378, %v395
  %v400 = vadd.f32 %v372, %v396
  %v401 = vadd.f32 %v373, %v397
  %v402 = vadd.f32 %v374, %v398
  %v403 = vadd.f32 %v375, %v399
  %404 = vset.pattern.permute.xlu0 7
  %405 = vperm.xlu0 %404, %v12
  %v406 = vpop.permute.xlu0 %405
  %v408 = vlaneseq
  %v409 = vshrl.u32 %v408, 7
  %v410 = vsub.s32 7, %v409
  %v411 = vrot.slane %v207, %v410
  %v412 = vlaneseq
  %v413 = vshrl.u32 %v412, 7
  %v414 = vsub.s32 7, %v413
  %v415 = vrot.slane %v208, %v414
  %v416 = vlaneseq
  %v417 = vshrl.u32 %v416, 7
  %v418 = vsub.s32 7, %v417
  %v419 = vrot.slane %v209, %v418
  %v420 = vlaneseq
  %v421 = vshrl.u32 %v420, 7
  %v422 = vsub.s32 7, %v421
  %v423 = vrot.slane %v210, %v422
  %v424 = vmul.f32 %v406, %v411
  %v425 = vmul.f32 %v406, %v415
  %v426 = vmul.f32 %v406, %v419
  %v427 = vmul.f32 %v406, %v423
  %v428 = vadd.f32 %v400, %v424
  %v429 = vadd.f32 %v401, %v425
  %v430 = vadd.f32 %v402, %v426
  %v431 = vadd.f32 %v403, %v427
  %v432 = vadd.f32 %v428, %v429
  %v433 = vadd.f32 %v432, %v430
  %v434 = vadd.f32 %v433, %v431
  %435 = vadd.xlane.f32.xlu0 %v434
  %v436 = vpop.xlane.xlu0 %435
  %v437 = vmul.f32 %v436, 0.001953125
  %v438 = vsub.f32 %v428, %v437
  %v439 = vsub.f32 %v429, %v437
  %v440 = vsub.f32 %v430, %v437
  %v441 = vsub.f32 %v431, %v437
  %v442 = vmul.f32 %v438, %v438
  %v443 = vmul.f32 %v439, %v439
  %v444 = vmul.f32 %v440, %v440
  %v445 = vmul.f32 %v441, %v441
  %v446 = vadd.f32 %v442, %v443
  %v447 = vadd.f32 %v446, %v444
  %v448 = vadd.f32 %v447, %v445
  %449 = vadd.xlane.f32.xlu0 %v448
  %v450 = vpop.xlane.xlu0 %449
  %v451 = vmul.f32 %v450, 0.001953125
  %v452 = vadd.f32 %v451, 1e-05
  %v453 = vrsqrt.pop %v452
  %v454 = vmul.f32 %v12, %v453
  %v455 = vmul.f32 %v437, %v454
  %457 = vrot.lane.b32.xlu0 %v455, 1
  %v458 = vpop.permute.xlu0 %457
  %v460 = vsub.f32 %v12, %v458
  %462 = vset.pattern.permute.xlu0 8
  %463 = vperm.xlu0 %462, %v454
  %v464 = vpop.permute.xlu0 %463
  %v466 = vmul.f32 %v428, %v464
  %v467 = vmul.f32 %v429, %v464
  %v468 = vmul.f32 %v430, %v464
  %v469 = vmul.f32 %v431, %v464
  %471 = vset.pattern.permute.xlu0 9
  %472 = vperm.xlu0 %471, %v460
  %v473 = vpop.permute.xlu0 %472
  %v475 = vadd.f32 %v466, %v473
  %v476 = vadd.f32 %v467, %v473
  %v477 = vadd.f32 %v468, %v473
  %v478 = vadd.f32 %v469, %v473
  %v479 = vmax.f32 %v475, 0.0
  %v480 = vmax.f32 %v476, 0.0
  %v481 = vmax.f32 %v477, 0.0
  %v482 = vmax.f32 %v478, 0.0
  %484 = vset.pattern.permute.xlu0 0
  %485 = vperm.xlu0 %484, %v13
  %v486 = vpop.permute.xlu0 %485
  %489 = vset.pattern.permute.xlu0 0
  %490 = vperm.xlu0 %489, %v14
  %v491 = vpop.permute.xlu0 %490
  %v493 = vlaneseq
  %v494 = vshrl.u32 %v493, 7
  %v495 = vsub.s32 0, %v494
  %v496 = vrot.slane %v479, %v495
  %v497 = vlaneseq
  %v498 = vshrl.u32 %v497, 7
  %v499 = vsub.s32 0, %v498
  %v500 = vrot.slane %v480, %v499
  %v501 = vlaneseq
  %v502 = vshrl.u32 %v501, 7
  %v503 = vsub.s32 0, %v502
  %v504 = vrot.slane %v481, %v503
  %v505 = vlaneseq
  %v506 = vshrl.u32 %v505, 7
  %v507 = vsub.s32 0, %v506
  %v508 = vrot.slane %v482, %v507
  %v509 = vmul.f32 %v486, %v496
  %v510 = vmul.f32 %v486, %v500
  %v511 = vmul.f32 %v486, %v504
  %v512 = vmul.f32 %v486, %v508
  %v513 = vmul.f32 %v491, %v496
  %v514 = vmul.f32 %v491, %v500
  %v515 = vmul.f32 %v491, %v504
  %v516 = vmul.f32 %v491, %v508
  %517 = vset.pattern.permute.xlu0 1
  %518 = vperm.xlu0 %517, %v13
  %v519 = vpop.permute.xlu0 %518
  %521 = vset.pattern.permute.xlu0 1
  %522 = vperm.xlu0 %521, %v14
  %v523 = vpop.permute.xlu0 %522
  %v525 = vlaneseq
  %v526 = vshrl.u32 %v525, 7
  %v527 = vsub.s32 1, %v526
  %v528 = vrot.slane %v479, %v527
  %v529 = vlaneseq
  %v530 = vshrl.u32 %v529, 7
  %v531 = vsub.s32 1, %v530
  %v532 = vrot.slane %v480, %v531
  %v533 = vlaneseq
  %v534 = vshrl.u32 %v533, 7
  %v535 = vsub.s32 1, %v534
  %v536 = vrot.slane %v481, %v535
  %v537 = vlaneseq
  %v538 = vshrl.u32 %v537, 7
  %v539 = vsub.s32 1, %v538
  %v540 = vrot.slane %v482, %v539
  %v541 = vmul.f32 %v519, %v528
  %v542 = vmul.f32 %v519, %v532
  %v543 = vmul.f32 %v519, %v536
  %v544 = vmul.f32 %v519, %v540
  %v545 = vmul.f32 %v523, %v528
  %v546 = vmul.f32 %v523, %v532
  %v547 = vmul.f32 %v523, %v536
  %v548 = vmul.f32 %v523, %v540
  %v549 = vadd.f32 %v509, %v541
  %v550 = vadd.f32 %v510, %v542
  %v551 = vadd.f32 %v511, %v543
  %v552 = vadd.f32 %v512, %v544
  %v553 = vadd.f32 %v513, %v545
  %v554 = vadd.f32 %v514, %v546
  %v555 = vadd.f32 %v515, %v547
  %v556 = vadd.f32 %v516, %v548
  %557 = vset.pattern.permute.xlu0 2
  %558 = vperm.xlu0 %557, %v13
  %v559 = vpop.permute.xlu0 %558
  %561 = vset.pattern.permute.xlu0 2
  %562 = vperm.xlu0 %561, %v14
  %v563 = vpop.permute.xlu0 %562
  %v565 = vlaneseq
  %v566 = vshrl.u32 %v565, 7
  %v567 = vsub.s32 2, %v566
  %v568 = vrot.slane %v479, %v567
  %v569 = vlaneseq
  %v570 = vshrl.u32 %v569, 7
  %v571 = vsub.s32 2, %v570
  %v572 = vrot.slane %v480, %v571
  %v573 = vlaneseq
  %v574 = vshrl.u32 %v573, 7
  %v575 = vsub.s32 2, %v574
  %v576 = vrot.slane %v481, %v575
  %v577 = vlaneseq
  %v578 = vshrl.u32 %v577, 7
  %v579 = vsub.s32 2, %v578
  %v580 = vrot.slane %v482, %v579
  %v581 = vmul.f32 %v559, %v568
  %v582 = vmul.f32 %v559, %v572
  %v583 = vmul.f32 %v559, %v576
  %v584 = vmul.f32 %v559, %v580
  %v585 = vmul.f32 %v563, %v568
  %v586 = vmul.f32 %v563, %v572
  %v587 = vmul.f32 %v563, %v576
  %v588 = vmul.f32 %v563, %v580
  %v589 = vadd.f32 %v549, %v581
  %v590 = vadd.f32 %v550, %v582
  %v591 = vadd.f32 %v551, %v583
  %v592 = vadd.f32 %v552, %v584
  %v593 = vadd.f32 %v553, %v585
  %v594 = vadd.f32 %v554, %v586
  %v595 = vadd.f32 %v555, %v587
  %v596 = vadd.f32 %v556, %v588
  %597 = vset.pattern.permute.xlu0 3
  %598 = vperm.xlu0 %597, %v13
  %v599 = vpop.permute.xlu0 %598
  %601 = vset.pattern.permute.xlu0 3
  %602 = vperm.xlu0 %601, %v14
  %v603 = vpop.permute.xlu0 %602
  %v605 = vlaneseq
  %v606 = vshrl.u32 %v605, 7
  %v607 = vsub.s32 3, %v606
  %v608 = vrot.slane %v479, %v607
  %v609 = vlaneseq
  %v610 = vshrl.u32 %v609, 7
  %v611 = vsub.s32 3, %v610
  %v612 = vrot.slane %v480, %v611
  %v613 = vlaneseq
  %v614 = vshrl.u32 %v613, 7
  %v615 = vsub.s32 3, %v614
  %v616 = vrot.slane %v481, %v615
  %v617 = vlaneseq
  %v618 = vshrl.u32 %v617, 7
  %v619 = vsub.s32 3, %v618
  %v620 = vrot.slane %v482, %v619
  %v621 = vmul.f32 %v599, %v608
  %v622 = vmul.f32 %v599, %v612
  %v623 = vmul.f32 %v599, %v616
  %v624 = vmul.f32 %v599, %v620
  %v625 = vmul.f32 %v603, %v608
  %v626 = vmul.f32 %v603, %v612
  %v627 = vmul.f32 %v603, %v616
  %v628 = vmul.f32 %v603, %v620
  %v629 = vadd.f32 %v589, %v621
  %v630 = vadd.f32 %v590, %v622
  %v631 = vadd.f32 %v591, %v623
  %v632 = vadd.f32 %v592, %v624
  %v633 = vadd.f32 %v593, %v625
  %v634 = vadd.f32 %v594, %v626
  %v635 = vadd.f32 %v595, %v627
  %v636 = vadd.f32 %v596, %v628
  %637 = vset.pattern.permute.xlu0 4
  %638 = vperm.xlu0 %637, %v13
  %v639 = vpop.permute.xlu0 %638
  %641 = vset.pattern.permute.xlu0 4
  %642 = vperm.xlu0 %641, %v14
  %v643 = vpop.permute.xlu0 %642
  %v645 = vlaneseq
  %v646 = vshrl.u32 %v645, 7
  %v647 = vsub.s32 4, %v646
  %v648 = vrot.slane %v479, %v647
  %v649 = vlaneseq
  %v650 = vshrl.u32 %v649, 7
  %v651 = vsub.s32 4, %v650
  %v652 = vrot.slane %v480, %v651
  %v653 = vlaneseq
  %v654 = vshrl.u32 %v653, 7
  %v655 = vsub.s32 4, %v654
  %v656 = vrot.slane %v481, %v655
  %v657 = vlaneseq
  %v658 = vshrl.u32 %v657, 7
  %v659 = vsub.s32 4, %v658
  %v660 = vrot.slane %v482, %v659
  %v661 = vmul.f32 %v639, %v648
  %v662 = vmul.f32 %v639, %v652
  %v663 = vmul.f32 %v639, %v656
  %v664 = vmul.f32 %v639, %v660
  %v665 = vmul.f32 %v643, %v648
  %v666 = vmul.f32 %v643, %v652
  %v667 = vmul.f32 %v643, %v656
  %v668 = vmul.f32 %v643, %v660
  %v669 = vadd.f32 %v629, %v661
  %v670 = vadd.f32 %v630, %v662
  %v671 = vadd.f32 %v631, %v663
  %v672 = vadd.f32 %v632, %v664
  %v673 = vadd.f32 %v633, %v665
  %v674 = vadd.f32 %v634, %v666
  %v675 = vadd.f32 %v635, %v667
  %v676 = vadd.f32 %v636, %v668
  %677 = vset.pattern.permute.xlu0 5
  %678 = vperm.xlu0 %677, %v13
  %v679 = vpop.permute.xlu0 %678
  %681 = vset.pattern.permute.xlu0 5
  %682 = vperm.xlu0 %681, %v14
  %v683 = vpop.permute.xlu0 %682
  %v685 = vlaneseq
  %v686 = vshrl.u32 %v685, 7
  %v687 = vsub.s32 5, %v686
  %v688 = vrot.slane %v479, %v687
  %v689 = vlaneseq
  %v690 = vshrl.u32 %v689, 7
  %v691 = vsub.s32 5, %v690
  %v692 = vrot.slane %v480, %v691
  %v693 = vlaneseq
  %v694 = vshrl.u32 %v693, 7
  %v695 = vsub.s32 5, %v694
  %v696 = vrot.slane %v481, %v695
  %v697 = vlaneseq
  %v698 = vshrl.u32 %v697, 7
  %v699 = vsub.s32 5, %v698
  %v700 = vrot.slane %v482, %v699
  %v701 = vmul.f32 %v679, %v688
  %v702 = vmul.f32 %v679, %v692
  %v703 = vmul.f32 %v679, %v696
  %v704 = vmul.f32 %v679, %v700
  %v705 = vmul.f32 %v683, %v688
  %v706 = vmul.f32 %v683, %v692
  %v707 = vmul.f32 %v683, %v696
  %v708 = vmul.f32 %v683, %v700
  %v709 = vadd.f32 %v669, %v701
  %v710 = vadd.f32 %v670, %v702
  %v711 = vadd.f32 %v671, %v703
  %v712 = vadd.f32 %v672, %v704
  %v713 = vadd.f32 %v673, %v705
  %v714 = vadd.f32 %v674, %v706
  %v715 = vadd.f32 %v675, %v707
  %v716 = vadd.f32 %v676, %v708
  %717 = vset.pattern.permute.xlu0 6
  %718 = vperm.xlu0 %717, %v13
  %v719 = vpop.permute.xlu0 %718
  %721 = vset.pattern.permute.xlu0 6
  %722 = vperm.xlu0 %721, %v14
  %v723 = vpop.permute.xlu0 %722
  %v725 = vlaneseq
  %v726 = vshrl.u32 %v725, 7
  %v727 = vsub.s32 6, %v726
  %v728 = vrot.slane %v479, %v727
  %v729 = vlaneseq
  %v730 = vshrl.u32 %v729, 7
  %v731 = vsub.s32 6, %v730
  %v732 = vrot.slane %v480, %v731
  %v733 = vlaneseq
  %v734 = vshrl.u32 %v733, 7
  %v735 = vsub.s32 6, %v734
  %v736 = vrot.slane %v481, %v735
  %v737 = vlaneseq
  %v738 = vshrl.u32 %v737, 7
  %v739 = vsub.s32 6, %v738
  %v740 = vrot.slane %v482, %v739
  %v741 = vmul.f32 %v719, %v728
  %v742 = vmul.f32 %v719, %v732
  %v743 = vmul.f32 %v719, %v736
  %v744 = vmul.f32 %v719, %v740
  %v745 = vmul.f32 %v723, %v728
  %v746 = vmul.f32 %v723, %v732
  %v747 = vmul.f32 %v723, %v736
  %v748 = vmul.f32 %v723, %v740
  %v749 = vadd.f32 %v709, %v741
  %v750 = vadd.f32 %v710, %v742
  %v751 = vadd.f32 %v711, %v743
  %v752 = vadd.f32 %v712, %v744
  %v753 = vadd.f32 %v713, %v745
  %v754 = vadd.f32 %v714, %v746
  %v755 = vadd.f32 %v715, %v747
  %v756 = vadd.f32 %v716, %v748
  %757 = vset.pattern.permute.xlu0 7
  %758 = vperm.xlu0 %757, %v13
  %v759 = vpop.permute.xlu0 %758
  %761 = vset.pattern.permute.xlu0 7
  %762 = vperm.xlu0 %761, %v14
  %v763 = vpop.permute.xlu0 %762
  %v765 = vlaneseq
  %v766 = vshrl.u32 %v765, 7
  %v767 = vsub.s32 7, %v766
  %v768 = vrot.slane %v479, %v767
  %v769 = vlaneseq
  %v770 = vshrl.u32 %v769, 7
  %v771 = vsub.s32 7, %v770
  %v772 = vrot.slane %v480, %v771
  %v773 = vlaneseq
  %v774 = vshrl.u32 %v773, 7
  %v775 = vsub.s32 7, %v774
  %v776 = vrot.slane %v481, %v775
  %v777 = vlaneseq
  %v778 = vshrl.u32 %v777, 7
  %v779 = vsub.s32 7, %v778
  %v780 = vrot.slane %v482, %v779
  %v781 = vmul.f32 %v759, %v768
  %v782 = vmul.f32 %v759, %v772
  %v783 = vmul.f32 %v759, %v776
  %v784 = vmul.f32 %v759, %v780
  %v785 = vmul.f32 %v763, %v768
  %v786 = vmul.f32 %v763, %v772
  %v787 = vmul.f32 %v763, %v776
  %v788 = vmul.f32 %v763, %v780
  %v789 = vadd.f32 %v749, %v781
  %v790 = vadd.f32 %v750, %v782
  %v791 = vadd.f32 %v751, %v783
  %v792 = vadd.f32 %v752, %v784
  %v793 = vadd.f32 %v753, %v785
  %v794 = vadd.f32 %v754, %v786
  %v795 = vadd.f32 %v755, %v787
  %v796 = vadd.f32 %v756, %v788
  %v797 = vadd.f32 %v789, %v790
  %v798 = vadd.f32 %v797, %v791
  %v799 = vadd.f32 %v798, %v792
  %800 = vadd.xlane.f32.xlu0 %v799
  %v801 = vpop.xlane.xlu0 %800
  %v802 = vadd.f32 %v793, %v794
  %v803 = vadd.f32 %v802, %v795
  %v804 = vadd.f32 %v803, %v796
  %805 = vadd.xlane.f32.xlu0 %v804
  %v806 = vpop.xlane.xlu0 %805
  %v807 = vmul.f32 %v801, 0.001953125
  %v808 = vmul.f32 %v806, 0.001953125
  %v809 = vsub.f32 %v789, %v807
  %v810 = vsub.f32 %v790, %v807
  %v811 = vsub.f32 %v791, %v807
  %v812 = vsub.f32 %v792, %v807
  %v813 = vsub.f32 %v793, %v808
  %v814 = vsub.f32 %v794, %v808
  %v815 = vsub.f32 %v795, %v808
  %v816 = vsub.f32 %v796, %v808
  %v817 = vmul.f32 %v809, %v809
  %v818 = vmul.f32 %v810, %v810
  %v819 = vmul.f32 %v811, %v811
  %v820 = vmul.f32 %v812, %v812
  %v821 = vmul.f32 %v813, %v813
  %v822 = vmul.f32 %v814, %v814
  %v823 = vmul.f32 %v815, %v815
  %v824 = vmul.f32 %v816, %v816
  %v825 = vadd.f32 %v817, %v818
  %v826 = vadd.f32 %v825, %v819
  %v827 = vadd.f32 %v826, %v820
  %828 = vadd.xlane.f32.xlu0 %v827
  %v829 = vpop.xlane.xlu0 %828
  %v830 = vadd.f32 %v821, %v822
  %v831 = vadd.f32 %v830, %v823
  %v832 = vadd.f32 %v831, %v824
  %833 = vadd.xlane.f32.xlu0 %v832
  %v834 = vpop.xlane.xlu0 %833
  %v835 = vmul.f32 %v829, 0.001953125
  %v836 = vmul.f32 %v834, 0.001953125
  %v837 = vadd.f32 %v835, 1e-05
  %v838 = vadd.f32 %v836, 1e-05
  %v839 = vrsqrt.pop %v837
  %v840 = vrsqrt.pop %v838
  %v841 = vmul.f32 %v13, %v839
  %v842 = vmul.f32 %v14, %v840
  %v843 = vmul.f32 %v807, %v841
  %v844 = vmul.f32 %v808, %v842
  %847 = vrot.lane.b32.xlu0 %v843, 1
  %v848 = vpop.permute.xlu0 %847
  %849 = vrot.lane.b32.xlu0 %v844, 1
  %v850 = vpop.permute.xlu0 %849
  %v853 = vsub.f32 %v13, %v848
  %v854 = vsub.f32 %v14, %v850
  %856 = vset.pattern.permute.xlu0 8
  %857 = vperm.xlu0 %856, %v841
  %v858 = vpop.permute.xlu0 %857
  %861 = vset.pattern.permute.xlu0 8
  %862 = vperm.xlu0 %861, %v842
  %v863 = vpop.permute.xlu0 %862
  %v865 = vmul.f32 %v789, %v858
  %v866 = vmul.f32 %v790, %v858
  %v867 = vmul.f32 %v791, %v858
  %v868 = vmul.f32 %v792, %v858
  %v869 = vmul.f32 %v793, %v863
  %v870 = vmul.f32 %v794, %v863
  %v871 = vmul.f32 %v795, %v863
  %v872 = vmul.f32 %v796, %v863
  %874 = vset.pattern.permute.xlu0 9
  %875 = vperm.xlu0 %874, %v853
  %v876 = vpop.permute.xlu0 %875
  %879 = vset.pattern.permute.xlu0 9
  %880 = vperm.xlu0 %879, %v854
  %v881 = vpop.permute.xlu0 %880
  %v883 = vadd.f32 %v865, %v876
  %v884 = vadd.f32 %v866, %v876
  %v885 = vadd.f32 %v867, %v876
  %v886 = vadd.f32 %v868, %v876
  %v887 = vadd.f32 %v869, %v881
  %v888 = vadd.f32 %v870, %v881
  %v889 = vadd.f32 %v871, %v881
  %v890 = vadd.f32 %v872, %v881
  %v891 = vmax.f32 %v883, 0.0
  %v892 = vmax.f32 %v884, 0.0
  %v893 = vmax.f32 %v885, 0.0
  %v894 = vmax.f32 %v886, 0.0
  %v895 = vmax.f32 %v887, 0.0
  %v896 = vmax.f32 %v888, 0.0
  %v897 = vmax.f32 %v889, 0.0
  %v898 = vmax.f32 %v890, 0.0
  %899 = vst [vmem:[%s2] sm:$0xff] %v891
  %900 = vst [vmem:[%s2 + $0x8] sm:$0xff] %v892
  %901 = vst [vmem:[%s2 + $0x10] sm:$0xff] %v893
  %902 = vst [vmem:[%s2 + $0x18] sm:$0xff] %v894
  %903 = vst [vmem:[%s2 + $0x20] sm:$0xff] %v895
  %904 = vst [vmem:[%s2 + $0x28] sm:$0xff] %v896
  %905 = vst [vmem:[%s2 + $0x30] sm:$0xff] %v897
  %906 = vst [vmem:[%s2 + $0x38] sm:$0xff] %v898
  // Predicated region
  $region10: #{weightnet_forward.1} parent=0 // pred_check
    _
  $region11: #{weightnet_forward.1} parent=0 // pred_check_branch
    %908 = sbr.rel (0) target = $region13
  $region12: #{weightnet_forward.1} parent=0 // pred_region
    _
  $region13: #{weightnet_forward.1} parent=0 // pred_fallthru
    _
  // Predicated region
  $region14: #{weightnet_forward.1} parent=0 // pred_check
    _
  $region15: #{weightnet_forward.1} parent=0 // pred_check_branch
    %910 = sbr.rel (0) target = $region17
  $region16: #{weightnet_forward.1} parent=0 // pred_region
    _
  $region17: #{weightnet_forward.1} parent=0 // pred_fallthru
    _

</llo_original>
